<compile_context>
chip_gen: v7x
topology: tpu7x:2x2x1
jax: 0.10.0
libtpu: 0.0.40
codegen_flags: <defaults>
</compile_context>

<pallas_src>
import functools

import jax
import jax.numpy as jnp
from jax import lax
from jax.experimental import pallas as pl
from jax.experimental.pallas import tpu as pltpu


def _ohem_ce_kernel(score_ref, target_ref, out_ref, *, ignore_label):
    """Per-pixel softmax cross-entropy + target-class probability.

    score_ref : (C, T) logits tile (any float dtype; cast to f32 in-kernel)
    target_ref: (1, T) i32 labels tile (ignore_label marks invalid pixels)
    out_ref   : (2, T) f32 -- row 0: per-pixel CE loss (0.0 where ignored, like torch
                ignore_index); row 1: softmax prob of the (clamped) target class.
    """
    s = score_ref[...].astype(jnp.float32)                      # (C, T)
    t = target_ref[...]                                         # (1, T) int32

    valid = t != ignore_label                                   # (1, T) bool
    t_clamped = jnp.where(valid, t, 0)                          # ignore -> class 0 (matches torch)

    # numerically stable softmax pieces over the class (sublane) axis
    m = jnp.max(s, axis=0, keepdims=True)                       # (1, T)
    e = jnp.exp(s - m)                                          # (C, T)
    sum_e = jnp.sum(e, axis=0, keepdims=True)                   # (1, T)

    # target-class logit via class-iota compare (no f32 one-hot matmul)
    cls_ids = lax.broadcasted_iota(jnp.int32, s.shape, 0)       # (C, T)
    sel = cls_ids == t_clamped                                  # (C, T) bool
    tgt_logit = jnp.sum(jnp.where(sel, s, 0.0), axis=0, keepdims=True)   # (1, T)

    loss = (m + jnp.log(sum_e)) - tgt_logit                     # -log p(target)
    prob = jnp.exp(-loss)                                       # exact softmax prob of target

    out_ref[...] = jnp.concatenate([jnp.where(valid, loss, 0.0), prob], axis=0)


def _vmem_budget():
    """Generation-aware (vmem_limit_bytes, per-block byte budget)."""
    conservative = (40 * 1024 * 1024, 3 * 1024 * 1024)   # safe on v7x (64 MiB VMEM / TC)
    roomy = (64 * 1024 * 1024, 5 * 1024 * 1024)          # v5e / v6e (128 MiB VMEM)
    cap = None
    try:
        info = pltpu.get_tpu_info()
        for name in ("vmem_capacity_bytes", "vmem_bytes", "vmem_size_bytes"):
            cap = getattr(info, name, None)
            if cap:
                break
    except Exception:
        cap = None
    if cap is None or cap <= 96 * 1024 * 1024:
        return conservative
    return roomy


def _pick_tile(num_classes, hw, n_batch, *, block_budget_bytes, max_tile=32768,
               min_parallel=8):
    """Largest 128-multiple pixel tile keeping one (C, tile) f32 block under budget,
    while leaving enough grid steps for 2-TC load balancing (v7x)."""
    t = block_budget_bytes // max(1, num_classes * 4)
    t = max(128, min(max_tile, (t // 128) * 128))
    if hw <= t:
        return hw                    # full-extent block allowed when hw fits in one tile
    # keep >= ~min_parallel grid steps so the ("parallel","parallel") grid load-balances
    while n_batch * ((hw + t - 1) // t) < min_parallel and t > 1024:
        t = max(1024, ((t // 2) // 128) * 128)
    return t


def _pixelwise_loss_and_prob(score, target, *, ignore_label):
    """score: (N, C, H, W) float logits (bf16 preferred), target: (N, H, W) int labels.

    Returns per-pixel (loss, prob) flattened to (N*H*W,) in N-major pixel order.
    """
    N, C, H, W = score.shape
    HW = H * W

    # free reshapes -- no transpose / pad pass over HBM; keep native dtype (bf16 ok)
    s3 = score.reshape(N, C, HW)
    t3 = target.reshape(N, 1, HW).astype(jnp.int32)

    vmem_limit, block_budget = _vmem_budget()
    tile = _pick_tile(C, HW, N, block_budget_bytes=block_budget)
    n_tiles = pl.cdiv(HW, tile)      # ragged last block handled by Pallas boundary masking

    kernel = functools.partial(_ohem_ce_kernel, ignore_label=ignore_label)

    out = pl.pallas_call(
        kernel,
        out_shape=jax.ShapeDtypeStruct((N, 2, HW), jnp.float32),
        grid_spec=pltpu.PrefetchScalarGridSpec(
            num_scalar_prefetch=0,
            grid=(N, n_tiles),
            in_specs=[
                pl.BlockSpec((None, C, tile), lambda n, i: (n, 0, i)),   # full class dim per tile
                pl.BlockSpec((None, 1, tile), lambda n, i: (n, 0, i)),
            ],
            out_specs=pl.BlockSpec((None, 2, tile), lambda n, i: (n, 0, i)),
        ),
        compiler_params=pltpu.CompilerParams(
            dimension_semantics=("parallel", "parallel"),
            vmem_limit_bytes=vmem_limit,
        ),
    )(s3, t3)

    loss = out[:, 0, :].reshape(-1)
    prob = out[:, 1, :].reshape(-1)
    return loss, prob


def ohem_cross_entropy(score, target, *, ignore_label=-1, thres=0.7, min_kept=100000):
    """Forward pass of OhemCrossEntropy (weights=[1], single-score branch -> _ohem_forward).

    score : (N, C, H, W) float logits
    target: (N, H, W)    int labels in [0, C) or == ignore_label
    Returns scalar float32 loss (mean over kept hard pixels).
    """
    min_kept = max(1, int(min_kept))

    loss, prob = _pixelwise_loss_and_prob(score, target, ignore_label=ignore_label)

    flat_target = target.reshape(-1)
    P = flat_target.shape[0]
    valid = flat_target != ignore_label
    n_valid = jnp.sum(valid.astype(jnp.int32))

    thres_f = jnp.asarray(thres, dtype=jnp.float32)
    n_below = jnp.sum((valid & (prob < thres_f)).astype(jnp.int32))

    k = int(min(min_kept + 1, P))

    def _topk_threshold(_):
        # k-th smallest valid target-class prob via top_k of negated values (k = min_kept+1)
        masked_prob = jnp.where(valid, prob, jnp.inf)
        neg_topk, _ = lax.top_k(-masked_prob, k)
        asc_small = -neg_topk                                    # k smallest probs, ascending
        idx = jnp.clip(jnp.minimum(jnp.int32(min_kept), n_valid - 1), 0, k - 1)
        return jnp.maximum(asc_small[idx], thres_f)

    # If strictly more than min_kept valid pixels already fall below `thres`, the
    # (min_kept)-th smallest prob is < thres and the OHEM threshold is exactly `thres`;
    # skip the expensive top_k at runtime.
    threshold = lax.cond(n_below > jnp.int32(min_kept),
                         lambda _: thres_f, _topk_threshold, None)

    # keep valid pixels whose target-class probability is below the threshold; mean their
    # losses.  (Like torch's .mean() on an empty selection, an empty kept set yields NaN.)
    keep = valid & (prob < threshold)
    kept = jnp.sum(keep.astype(jnp.float32))
    return jnp.sum(jnp.where(keep, loss, 0.0)) / kept


if __name__ == "__main__":
    key = jax.random.PRNGKey(0)
    N, C, H, W = 2, 4, 16, 16
    k_score, k_tgt, k_ign = jax.random.split(key, 3)

    # bf16 score exercises the recommended low-HBM-traffic input path; the kernel casts
    # to f32 internally for the softmax math.
    score = jax.random.normal(k_score, (N, C, H, W), dtype=jnp.float32).astype(jnp.bfloat16)
    target = jax.random.randint(k_tgt, (N, H, W), 0, C).astype(jnp.int32)
    # sprinkle some ignore_label pixels to exercise the mask path
    ignore_mask = jax.random.bernoulli(k_ign, 0.1, (N, H, W))
    target = jnp.where(ignore_mask, -1, target)

    loss_fn = jax.jit(functools.partial(
        ohem_cross_entropy, ignore_label=-1, thres=0.7, min_kept=50))
    out = loss_fn(score, target)
    jax.block_until_ready(out)
    print("KERNEL_OK")
</pallas_src>

<mosaic_0001>
module attributes {stable_mosaic.version = 11 : i64} {
  func.func @_ohem_ce_kernel(%arg0: i32, %arg1: i32, %arg2: memref<1x4x256xbf16, #tpu.memory_space<vmem>>, %arg3: memref<1x1x256xi32, #tpu.memory_space<vmem>>, %arg4: memref<1x2x256xf32, #tpu.memory_space<vmem>>) attributes {dimension_semantics = [#tpu.dimension_semantics<parallel>, #tpu.dimension_semantics<parallel>], iteration_bounds = array<i64: 2, 1>, scalar_prefetch = 0 : i64, scratch_operands = 0 : i64, tpu.core_type = #tpu.core_type<tc>, window_params = [{transform_indices = @transform_0, window_bounds = array<i64: 1, 4, 256>}, {transform_indices = @transform_1, window_bounds = array<i64: 1, 1, 256>}, {transform_indices = @transform_2, window_bounds = array<i64: 1, 2, 256>}]} {
    %c0 = arith.constant 0 : index
    %c0_0 = arith.constant 0 : index
    %c0_1 = arith.constant 0 : index
    %0 = vector.load %arg2[%c0, %c0_0, %c0_1] : memref<1x4x256xbf16, #tpu.memory_space<vmem>>, vector<1x4x256xbf16>
    %1 = vector.shape_cast %0 : vector<1x4x256xbf16> to vector<4x256xbf16>
    %2 = arith.extf %1 : vector<4x256xbf16> to vector<4x256xf32>
    %c0_2 = arith.constant 0 : index
    %c0_3 = arith.constant 0 : index
    %c0_4 = arith.constant 0 : index
    %3 = vector.load %arg3[%c0_2, %c0_3, %c0_4] : memref<1x1x256xi32, #tpu.memory_space<vmem>>, vector<1x1x256xi32>
    %4 = vector.shape_cast %3 : vector<1x1x256xi32> to vector<1x256xi32>
    %c-1_i32 = arith.constant -1 : i32
    %5 = vector.broadcast %c-1_i32 : i32 to vector<1x256xi32>
    %6 = arith.cmpi ne, %4, %5 : vector<1x256xi32>
    %c0_i32 = arith.constant 0 : i32
    %7 = vector.broadcast %c0_i32 : i32 to vector<1x256xi32>
    %8 = arith.select %6, %4, %7 : vector<1x256xi1>, vector<1x256xi32>
    %cst = arith.constant dense<0xFF800000> : vector<256xf32>
    %9 = vector.multi_reduction <maximumf>, %2, %cst [0] : vector<4x256xf32> to vector<256xf32>
    %10 = vector.shape_cast %9 : vector<256xf32> to vector<1x256xf32>
    %11 = vector.broadcast %10 : vector<1x256xf32> to vector<4x256xf32>
    %12 = arith.subf %2, %11 : vector<4x256xf32>
    %13 = math.exp %12 : vector<4x256xf32>
    %cst_5 = arith.constant dense<0.000000e+00> : vector<256xf32>
    %14 = vector.multi_reduction <add>, %13, %cst_5 [0] : vector<4x256xf32> to vector<256xf32>
    %15 = vector.shape_cast %14 : vector<256xf32> to vector<1x256xf32>
    %16 = tpu.iota {dimensions = array<i32: 0>} : vector<4x256xi32>
    %17 = vector.broadcast %8 : vector<1x256xi32> to vector<4x256xi32>
    %18 = arith.cmpi eq, %16, %17 : vector<4x256xi32>
    %cst_6 = arith.constant 0.000000e+00 : f32
    %19 = vector.broadcast %cst_6 : f32 to vector<4x256xf32>
    %20 = arith.select %18, %2, %19 : vector<4x256xi1>, vector<4x256xf32>
    %cst_7 = arith.constant dense<0.000000e+00> : vector<256xf32>
    %21 = vector.multi_reduction <add>, %20, %cst_7 [0] : vector<4x256xf32> to vector<256xf32>
    %22 = vector.shape_cast %21 : vector<256xf32> to vector<1x256xf32>
    %23 = math.log %15 : vector<1x256xf32>
    %24 = arith.addf %10, %23 : vector<1x256xf32>
    %25 = arith.subf %24, %22 : vector<1x256xf32>
    %cst_8 = arith.constant 0.000000e+00 : f32
    %26 = vector.broadcast %cst_8 : f32 to vector<1x256xf32>
    %27 = arith.subf %26, %25 : vector<1x256xf32>
    %28 = math.exp %27 : vector<1x256xf32>
    %cst_9 = arith.constant 0.000000e+00 : f32
    %29 = vector.broadcast %cst_9 : f32 to vector<1x256xf32>
    %30 = arith.select %6, %25, %29 : vector<1x256xi1>, vector<1x256xf32>
    %31 = tpu.concatenate %30, %28 in 0 : vector<1x256xf32>, vector<1x256xf32> -> vector<2x256xf32>
    %c0_10 = arith.constant 0 : index
    %c0_11 = arith.constant 0 : index
    %c0_12 = arith.constant 0 : index
    %32 = vector.load %arg4[%c0_10, %c0_11, %c0_12] : memref<1x2x256xf32, #tpu.memory_space<vmem>>, vector<1x2x256xf32>
    %33 = vector.shape_cast %32 : vector<1x2x256xf32> to vector<2x256xf32>
    %34 = vector.shape_cast %31 : vector<2x256xf32> to vector<1x2x256xf32>
    tpu.vector_store %arg4[%c0_10, %c0_11, %c0_12], %34 {strides = array<i32>} : memref<1x2x256xf32, #tpu.memory_space<vmem>>, vector<1x2x256xf32>,
    return
  }
  func.func @transform_0(%arg0: i32, %arg1: i32) -> (i32, i32, i32) {
    %c0_i32 = arith.constant 0 : i32
    %c0_i32_0 = arith.constant 0 : i32
    return %arg0, %c0_i32, %arg1 : i32, i32, i32
  }
  func.func @transform_1(%arg0: i32, %arg1: i32) -> (i32, i32, i32) {
    %c0_i32 = arith.constant 0 : i32
    %c0_i32_0 = arith.constant 0 : i32
    return %arg0, %c0_i32, %arg1 : i32, i32, i32
  }
  func.func @transform_2(%arg0: i32, %arg1: i32) -> (i32, i32, i32) {
    %c0_i32 = arith.constant 0 : i32
    %c0_i32_0 = arith.constant 0 : i32
    return %arg0, %c0_i32, %arg1 : i32, i32, i32
  }
}

</mosaic_0001>

<llo_original>
// kernel: ohem_cross_entropy.1
$region0: #{ohem_cross_entropy.1}
  #allocation0 [shape = 'u32[]', space=smem, size = 0x4, offset = 0x4, fixed_abs, tag = 'smem constant byte address 0x4 - core index']
  #allocation1 [shape = 'u32[144,128]{1,0:T(1,128)}', space=vmem, size = 0x12000, scoped, tag = 'internal scratch']
  %s0 = inlined_call_operand.vmem [shape: bf16[2,4,256], index: 0, kind: input, shape index: {}]
  %s1 = inlined_call_operand.vmem [shape: s32[2,1,256], index: 1, kind: input, shape index: {}]
  %s2 = inlined_call_operand.vmem [shape: f32[2,2,256], index: 2, kind: output, shape index: {}]
  %s3 = sld [smem:[#allocation0]]
  $region41: #{ohem_cross_entropy.1} parent=0
    _
  %s5 = ssub.s32 1, %s3
  %s6 = scalar_select 0, %s5, %s3
  loop: start=0, step=1, limit=4
  $region2: #{ohem_cross_entropy.1} parent=0 // loop_pre_header
    _
  $region3: #{ohem_cross_entropy.1} parent=0 // loop_header
    %s8 = sphi 0, %s12
    %p9 = scmp.ge.s32.totalorder %s8, 4
    %s15 = sphi 0, %s27
    %s16 = sphi 0, %s23
    %s17 = sphi 0, %s15
    %s18 = sphi 0, %s16
    %s19 = sphi 0, %s17
    %s20 = sphi 0, %s18
    %s32 = sphi 0, %s34
    %s35 = sphi 0, %s32
    %s36 = sphi 0, %s35
    %s52 = sphi 0, %s36
    %s60 = sphi 0, %s62
    %s63 = sphi 0, %s60
    %s64 = sphi 0, %s63
    %s80 = sphi 0, %s64
    %s88 = sphi 0, %s90
    %s91 = sphi 0, %s88
    %s92 = sphi 0, %s91
    %s108 = sphi 0, %s92
  $region4: #{ohem_cross_entropy.1} parent=0 // loop_header_branch
    %11 = sbr.rel (%p9) target = $region8
  $region5: #{ohem_cross_entropy.1} parent=0 // loop_body
    %s13 = ssub.s32 %s8, 1
    %s14 = ssub.s32 %s8, 2
    %s21 = sadd.s32 1, %s16
    %p22 = scmp.ge.s32.totalorder %s21, 1
    %s23 = scalar_select %p22, 0, %s21
    %s24 = sadd.s32 1, %s15
    %s25 = scalar_select %p22, %s24, %s15
    %p26 = scmp.ge.s32.totalorder %s25, 2
    %s27 = scalar_select %p26, 0, %s25
    %s28 = ssub.s32 %s15, %s27
    %s29 = ssub.s32 %s16, %s23
    %s30 = sor.u32 %s28, %s29
    %p31 = scmp.eq.s32.totalorder %s30, 0
    %s33 = sadd.s32 %s32, 1
    %s34 = scalar_select %p31, %s32, %s33
    %p37 = pneg %p31
    %p38 = scmp.eq.s32.totalorder %s8, 1
    %p39 = por %p37, %p38
    %p40 = scmp.ne.s32.totalorder %s32, %s35
    %p41 = scmp.eq.s32.totalorder %s8, 0
    %p42 = por %p40, %p41
    %p43 = scmp.ne.s32.totalorder %s32, %s35
    %p44 = scmp.eq.s32.totalorder %s13, 1
    %p45 = por %p43, %p44
    %p46 = scmp.ne.s32.totalorder %s35, %s36
    %p47 = scmp.eq.s32.totalorder %s13, 0
    %p48 = por %p46, %p47
    %p49 = scmp.ne.s32.totalorder %s35, %s36
    %p50 = scmp.eq.s32.totalorder %s14, 1
    %p51 = por %p49, %p50
    %p53 = scmp.ne.s32.totalorder %s36, %s52
    %p54 = scmp.eq.s32.totalorder %s14, 0
    %p55 = por %p53, %p54
    %s56 = ssub.s32 %s15, %s27
    %s57 = ssub.s32 %s16, %s23
    %s58 = sor.u32 %s56, %s57
    %p59 = scmp.eq.s32.totalorder %s58, 0
    %s61 = sadd.s32 %s60, 1
    %s62 = scalar_select %p59, %s60, %s61
    %p65 = pneg %p59
    %p66 = scmp.eq.s32.totalorder %s8, 1
    %p67 = por %p65, %p66
    %p68 = scmp.ne.s32.totalorder %s60, %s63
    %p69 = scmp.eq.s32.totalorder %s8, 0
    %p70 = por %p68, %p69
    %p71 = scmp.ne.s32.totalorder %s60, %s63
    %p72 = scmp.eq.s32.totalorder %s13, 1
    %p73 = por %p71, %p72
    %p74 = scmp.ne.s32.totalorder %s63, %s64
    %p75 = scmp.eq.s32.totalorder %s13, 0
    %p76 = por %p74, %p75
    %p77 = scmp.ne.s32.totalorder %s63, %s64
    %p78 = scmp.eq.s32.totalorder %s14, 1
    %p79 = por %p77, %p78
    %p81 = scmp.ne.s32.totalorder %s64, %s80
    %p82 = scmp.eq.s32.totalorder %s14, 0
    %p83 = por %p81, %p82
    %s84 = ssub.s32 %s15, %s27
    %s85 = ssub.s32 %s16, %s23
    %s86 = sor.u32 %s84, %s85
    %p87 = scmp.eq.s32.totalorder %s86, 0
    %s89 = sadd.s32 %s88, 1
    %s90 = scalar_select %p87, %s88, %s89
    %p93 = pneg %p87
    %p94 = scmp.eq.s32.totalorder %s8, 1
    %p95 = por %p93, %p94
    %p96 = scmp.ne.s32.totalorder %s88, %s91
    %p97 = scmp.eq.s32.totalorder %s8, 0
    %p98 = por %p96, %p97
    %p99 = scmp.ne.s32.totalorder %s88, %s91
    %p100 = scmp.eq.s32.totalorder %s13, 1
    %p101 = por %p99, %p100
    %p102 = scmp.ne.s32.totalorder %s91, %s92
    %p103 = scmp.eq.s32.totalorder %s13, 0
    %p104 = por %p102, %p103
    %p105 = scmp.ne.s32.totalorder %s91, %s92
    %p106 = scmp.eq.s32.totalorder %s14, 1
    %p107 = por %p105, %p106
    %p109 = scmp.ne.s32.totalorder %s92, %s108
    %p110 = scmp.eq.s32.totalorder %s14, 0
    %p111 = por %p109, %p110
    %p112 = scmp.le.s32.totalorder 1, %s8
    %p113 = scmp.lt.s32.totalorder %s8, 3
    %p114 = pnand %p112, %p113
    %p115 = pneg %p114
    // Predicated region
    $region9: #{ohem_cross_entropy.1} parent=5 // pred_check
      _
    $region10: #{ohem_cross_entropy.1} parent=5 // pred_check_branch
      %117 = sbr.rel (%p114) target = $region12
    $region11: #{ohem_cross_entropy.1} parent=5 // pred_region
      %s118 = ssub.s32 %s8, 1
    $region12: #{ohem_cross_entropy.1} parent=5 // pred_fallthru
      _
    %p119 = scmp.lt.s32.totalorder %s8, 2
    // Predicated region
    $region13: #{ohem_cross_entropy.1} parent=5 // pred_check
      %p120 = pneg %p119
    $region14: #{ohem_cross_entropy.1} parent=5 // pred_check_branch
      %122 = sbr.rel (%p120) target = $region16
    $region15: #{ohem_cross_entropy.1} parent=5 // pred_region
      // Predicated region
      $region17: #{ohem_cross_entropy.1} parent=15 // pred_check
        %p123 = pneg %p42
      $region18: #{ohem_cross_entropy.1} parent=15 // pred_check_branch
        %125 = sbr.rel (%p123) target = $region20
      $region19: #{ohem_cross_entropy.1} parent=15 // pred_region
        %s126 = smul.u32 2, %s16
        %p127 = scmp.lt.s32.totalorder %s15, 1
        %s128 = scalar_select %p127, %s15, 1
        %p129 = scmp.lt.s32.totalorder %s126, 1
        %s130 = scalar_select %p129, %s126, 1
        %s131 = smul.addr %s128, 2
        %s132 = sadd.s32 %s130, %s131
        %s133 = smul.addr %s132, 2
        %s134 = scalar_lea.vmem %s0, %s133
        %s135 = smul.u32 2, %s16
      $region20: #{ohem_cross_entropy.1} parent=15 // pred_fallthru
        _
      // Predicated region
      $region21: #{ohem_cross_entropy.1} parent=15 // pred_check
        %p136 = pneg %p70
      $region22: #{ohem_cross_entropy.1} parent=15 // pred_check_branch
        %138 = sbr.rel (%p136) target = $region24
      $region23: #{ohem_cross_entropy.1} parent=15 // pred_region
        %s139 = smul.u32 2, %s16
        %p140 = scmp.lt.s32.totalorder %s15, 1
        %s141 = scalar_select %p140, %s15, 1
        %p142 = scmp.lt.s32.totalorder %s139, 1
        %s143 = scalar_select %p142, %s139, 1
        %s144 = smul.addr %s141, 2
        %s145 = sadd.s32 %s143, %s144
        %s146 = scalar_lea.vmem %s1, %s145
        %s147 = smul.u32 2, %s16
      $region24: #{ohem_cross_entropy.1} parent=15 // pred_fallthru
        _
    $region16: #{ohem_cross_entropy.1} parent=5 // pred_fallthru
      _
    %p148 = scmp.le.s32.totalorder 1, %s8
    %p149 = scmp.lt.s32.totalorder %s8, 3
    %p150 = pnand %p148, %p149
    %p151 = pneg %p150
    // Predicated region
    $region25: #{ohem_cross_entropy.1} parent=5 // pred_check
      _
    $region26: #{ohem_cross_entropy.1} parent=5 // pred_check_branch
      %153 = sbr.rel (%p150) target = $region28
    $region27: #{ohem_cross_entropy.1} parent=5 // pred_region
      %s154 = ssub.s32 %s8, 1
      %s155 = smul.u32 2, %s18
      %p156 = scmp.lt.s32.totalorder %s17, 1
      %s157 = scalar_select %p156, %s17, 1
      %p158 = scmp.lt.s32.totalorder %s155, 1
      %s159 = scalar_select %p158, %s155, 1
      %s160 = smul.addr %s157, 2
      %s161 = sadd.s32 %s159, %s160
      %s162 = smul.addr %s161, 2
      %s163 = scalar_lea.vmem %s0, %s162
      %p164 = pneg %p48
      %p165 = pneg %p45
      %s166 = smul.u32 2, %s18
      %p167 = scmp.lt.s32.totalorder %s17, 1
      %s168 = scalar_select %p167, %s17, 1
      %p169 = scmp.lt.s32.totalorder %s166, 1
      %s170 = scalar_select %p169, %s166, 1
      %s171 = smul.addr %s168, 2
      %s172 = sadd.s32 %s170, %s171
      %s173 = scalar_lea.vmem %s1, %s172
      %p174 = pneg %p76
      %p175 = pneg %p73
      %p176 = pneg %p104
      %p177 = pneg %p101
      %s178 = smul.u32 2, %s18
      %p179 = scmp.lt.s32.totalorder %s17, 1
      %s180 = scalar_select %p179, %s17, 1
      %p181 = scmp.lt.s32.totalorder %s178, 1
      %s182 = scalar_select %p181, %s178, 1
      %s183 = smul.addr %s180, 2
      %s184 = sadd.s32 %s182, %s183
      %s185 = smul.addr %s184, 2
      %s186 = scalar_lea.vmem %s2, %s185
      %s187 = smul.u32 2, %s18
      %p188 = scmp.lt.s32.totalorder %s17, 1
      %s189 = scalar_select %p188, %s17, 1
      %p190 = scmp.lt.s32.totalorder %s187, 1
      %s191 = scalar_select %p190, %s187, 1
      %s192 = smul.addr %s189, 2
      %s193 = sadd.s32 %s191, %s192
      %s194 = smul.addr %s193, 2
      %s195 = scalar_lea.vmem %s0, %s194
      %s196 = smul.u32 2, %s18
      %s197 = smul.u32 2, %s18
      %p198 = scmp.lt.s32.totalorder %s17, 1
      %s199 = scalar_select %p198, %s17, 1
      %p200 = scmp.lt.s32.totalorder %s197, 1
      %s201 = scalar_select %p200, %s197, 1
      %s202 = smul.addr %s199, 2
      %s203 = sadd.s32 %s201, %s202
      %s204 = scalar_lea.vmem %s1, %s203
      %s205 = smul.u32 2, %s18
      %s206 = smul.u32 2, %s18
      %p207 = scmp.lt.s32.totalorder %s17, 1
      %s208 = scalar_select %p207, %s17, 1
      %p209 = scmp.lt.s32.totalorder %s206, 1
      %s210 = scalar_select %p209, %s206, 1
      %s211 = smul.addr %s208, 2
      %s212 = sadd.s32 %s210, %s211
      %s213 = smul.addr %s212, 2
      %s214 = scalar_lea.vmem %s2, %s213
      %s215 = smul.u32 2, %s18
      %v216 = vld [vmem:[%s195] sm:$0xf]
      %v217 = vunpack.c.l.bf16 %v216
      %v218 = vld [vmem:[%s204] sm:$0x3]
      %vm219 = vcmp.ne.s32.totalorder %v218, 4294967295
      %v220 = vsel %vm219, %v218, 0
      %v222 = vcombine.high %v217, %v217
      %vm224 = vcmask 1043456
      %v225 = vsel %vm224, %v217, -inf
      %v226 = vrot.slane %v225, 4
      %v227 = vmax.f32 %v225, %v226
      %v228 = vrot.slane %v227, 2
      %v229 = vmax.f32 %v227, %v228
      %v230 = vrot.slane %v229, 1
      %v231 = vmax.f32 %v229, %v230
      %v232 = vsel %vm224, %v222, -inf
      %v233 = vrot.slane %v232, 4
      %v234 = vmax.f32 %v232, %v233
      %v235 = vrot.slane %v234, 2
      %v236 = vmax.f32 %v234, %v235
      %v237 = vrot.slane %v236, 1
      %v238 = vmax.f32 %v236, %v237
      %v241 = vcombine.low %v231, %v238
      %v243 = vsub.f32 %v217, %v241
      %v244 = vmul.f32 %v243, 1.442695
      %v245 = vpow.pop %v244
      %v247 = vcombine.high %v245, %v245
      %v249 = vsel %vm224, %v245, 0.0
      %v250 = vrot.slane %v249, 4
      %v251 = vadd.f32 %v249, %v250
      %v252 = vrot.slane %v251, 2
      %v253 = vadd.f32 %v251, %v252
      %v254 = vrot.slane %v253, 1
      %v255 = vadd.f32 %v253, %v254
      %v256 = vsel %vm224, %v247, 0.0
      %v257 = vrot.slane %v256, 4
      %v258 = vadd.f32 %v256, %v257
      %v259 = vrot.slane %v258, 2
      %v260 = vadd.f32 %v258, %v259
      %v261 = vrot.slane %v260, 1
      %v262 = vadd.f32 %v260, %v261
      %v263 = vlaneseq
      %v264 = vshrl.u32 %v263, 7
      %v265 = vlaneseq
      %v266 = vshrl.u32 %v265, 7
      %v267 = vsub.s32 0, %v266
      %v268 = vrot.slane %v220, %v267
      %v269 = vlaneseq
      %v270 = vshrl.u32 %v269, 7
      %v271 = vsub.s32 1, %v270
      %v272 = vrot.slane %v220, %v271
      %vm273 = vcmp.eq.s32.totalorder %v264, %v268
      %vm274 = vcmp.eq.s32.totalorder %v264, %v272
      %v275 = vsel %vm273, %v217, 0.0
      %v276 = vsel %vm274, %v222, 0.0
      %v277 = vsel %vm224, %v275, 0.0
      %v278 = vrot.slane %v277, 4
      %v279 = vadd.f32 %v277, %v278
      %v280 = vrot.slane %v279, 2
      %v281 = vadd.f32 %v279, %v280
      %v282 = vrot.slane %v281, 1
      %v283 = vadd.f32 %v281, %v282
      %v284 = vsel %vm224, %v276, 0.0
      %v285 = vrot.slane %v284, 4
      %v286 = vadd.f32 %v284, %v285
      %v287 = vrot.slane %v286, 2
      %v288 = vadd.f32 %v286, %v287
      %v289 = vrot.slane %v288, 1
      %v290 = vadd.f32 %v288, %v289
      %v291 = vlog2.pop %v255
      %v292 = vmul.f32 %v291, 0.6931472
      %v293 = vlog2.pop %v262
      %v294 = vmul.f32 %v293, 0.6931472
      %v295 = vadd.f32 %v231, %v292
      %v296 = vadd.f32 %v238, %v294
      %v297 = vsub.f32 %v295, %v283
      %v298 = vsub.f32 %v296, %v290
      %v299 = vsub.f32 0.0, %v297
      %v300 = vsub.f32 0.0, %v298
      %v301 = vmul.f32 %v299, 1.442695
      %v302 = vpow.pop %v301
      %v303 = vmul.f32 %v300, 1.442695
      %v304 = vpow.pop %v303
      %v307 = vcombine.low %v297, %v298
      %v309 = vunpack.c.l.s4 1966171168
      %v310 = vunpack.c.0.s8 %v309
      %v311 = vlaneseq
      %v312 = vshrl.u32 %v311, 7
      %v313 = vsub.s32 %v310, %v312
      %v314 = vrot.slane %v307, %v313
      %v316 = vunpack.c.l.s4 1966171168
      %v317 = vunpack.c.0.s8 %v316
      %v318 = vlaneseq
      %v319 = vshrl.u32 %v318, 7
      %v320 = vsub.s32 %v317, %v319
      %v321 = vrot.slane %v314, %v320
      %v323 = vsel %vm219, %v321, 0.0
      %v325 = vlaneseq
      %v326 = vshrl.u32 %v325, 7
      %v327 = vsub.s32 0, %v326
      %v328 = vrot.slane %v323, %v327
      %v329 = vlaneseq
      %v330 = vshrl.u32 %v329, 7
      %v331 = vsub.s32 1, %v330
      %v332 = vrot.slane %v323, %v331
      %vm335 = vcmask 1040384
      %v336 = vsel %vm335, %v328, %v302
      %v337 = vsel %vm335, %v332, %v304
      %v340 = vcombine.low %v336, %v337
      %v342 = vunpack.c.l.s4 1983009808
      %v343 = vunpack.c.0.s8 %v342
      %v344 = vlaneseq
      %v345 = vshrl.u32 %v344, 7
      %v346 = vsub.s32 %v343, %v345
      %v347 = vrot.slane %v340, %v346
      %349 = vst [vmem:[%s214] sm:$0xf] %v347
      %s350 = smul.u32 2, %s18
      %p351 = scmp.lt.s32.totalorder %s17, 1
      %s352 = scalar_select %p351, %s17, 1
      %p353 = scmp.lt.s32.totalorder %s350, 1
      %s354 = scalar_select %p353, %s350, 1
      %s355 = smul.addr %s352, 2
      %s356 = sadd.s32 %s354, %s355
      %s357 = smul.addr %s356, 2
      %s358 = scalar_lea.vmem %s2, %s357
      // Predicated region
      $region29: #{ohem_cross_entropy.1} parent=27 // pred_check
        %p359 = pneg %p101
      $region30: #{ohem_cross_entropy.1} parent=27 // pred_check_branch
        %361 = sbr.rel (%p359) target = $region32
      $region31: #{ohem_cross_entropy.1} parent=27 // pred_region
        %s362 = smul.u32 2, %s18
      $region32: #{ohem_cross_entropy.1} parent=27 // pred_fallthru
        _
    $region28: #{ohem_cross_entropy.1} parent=5 // pred_fallthru
      _
    %p363 = scmp.le.s32.totalorder 2, %s8
    // Predicated region
    $region33: #{ohem_cross_entropy.1} parent=5 // pred_check
      %p364 = pneg %p363
    $region34: #{ohem_cross_entropy.1} parent=5 // pred_check_branch
      %366 = sbr.rel (%p364) target = $region36
    $region35: #{ohem_cross_entropy.1} parent=5 // pred_region
      %s367 = ssub.s32 %s8, 2
      // Predicated region
      $region37: #{ohem_cross_entropy.1} parent=35 // pred_check
        %p368 = pneg %p107
      $region38: #{ohem_cross_entropy.1} parent=35 // pred_check_branch
        %370 = sbr.rel (%p368) target = $region40
      $region39: #{ohem_cross_entropy.1} parent=35 // pred_region
        %s371 = smul.u32 2, %s20
        %p372 = scmp.lt.s32.totalorder %s19, 1
        %s373 = scalar_select %p372, %s19, 1
        %p374 = scmp.lt.s32.totalorder %s371, 1
        %s375 = scalar_select %p374, %s371, 1
        %s376 = smul.addr %s373, 2
        %s377 = sadd.s32 %s375, %s376
        %s378 = smul.addr %s377, 2
        %s379 = scalar_lea.vmem %s2, %s378
      $region40: #{ohem_cross_entropy.1} parent=35 // pred_fallthru
        _
    $region36: #{ohem_cross_entropy.1} parent=5 // pred_fallthru
      _
  $region6: #{ohem_cross_entropy.1} parent=0 // loop_footer
    %s12 = sadd.s32 1, %s8
  $region7: #{ohem_cross_entropy.1} parent=0 // loop_footer_branch
    %7 = sbr.rel target = $region3
  $region8: #{ohem_cross_entropy.1} parent=0 // loop_exit
    _

</llo_original>
